<compile_context>
chip_gen: v6e
topology: v6e:2x2x1
jax: 0.10.0
libtpu: 0.0.40
codegen_flags: <defaults>
</compile_context>

<pallas_src>
import jax
import jax.numpy as jnp
from jax.experimental import pallas as pl
from jax.experimental.pallas import tpu as pltpu

# ---- problem sizes (small, consistent with a video-saliency detector) ----
T = 2          # number of frames (x.size(0) loop in forward_impl)
CIN = 4        # input channels
H = W = 16     # spatial
CB = 32        # backbone channels
CN = 32        # neck channels
CH = 32        # sequencer hidden channels
HW = H * W
KTAPS = 9      # 3x3 conv taps
K0 = KTAPS * CIN          # 36  raw im2col depth
KPAD = 40                 # padded K: col 36 = bias ones-row, cols 37..39 = 0

# packed-parameter row offsets (all multiples of 8 -> sublane-aligned views)
_R_WBB = 0      # rows   0: 32, cols 0:KPAD -> [Wbb^T | bb^T | 0 pad]
_R_WN = 32      # rows  32: 64, cols 0:CB   -> Wn^T
_R_WX = 64      # rows  64: 96, cols 0:CN   -> Wx^T
_R_WH = 96      # rows  96:128, cols 0:CH   -> Wh^T
_R_BN = 128     # rows 128:160, col 0       -> bn^T  [CN,1]
_R_BS = 160     # rows 160:192, col 0       -> bs^T  [CH,1]
_R_HD = 192     # row  192, cols 0:CH -> whd^T row ; col CH -> bhd scalar
_R_TOT = 200


def _sal_detector_kernel(xcol_ref, wpack_ref, h0_ref, sal_ref, hout_ref):
    # ---- backbone 3x3 conv (im2col, bias folded via ones row) + ReLU -------
    # channels-on-sublanes / pixels-on-lanes: every intermediate is [C, T*HW].
    featb = jnp.maximum(
        jnp.dot(wpack_ref[_R_WBB:_R_WBB + CB, :], xcol_ref[...],
                preferred_element_type=jnp.float32), 0.0)          # [CB, T*HW]

    # ---- neck 1x1 conv + ReLU ----------------------------------------------
    featn = jnp.maximum(
        jnp.dot(wpack_ref[_R_WN:_R_WN + CN, 0:CB], featb,
                preferred_element_type=jnp.float32)
        + wpack_ref[_R_BN:_R_BN + CN, 0:1], 0.0)                    # [CN, T*HW]

    # ---- sequencer: batched (non-recurrent) input projection ---------------
    xproj = (jnp.dot(wpack_ref[_R_WX:_R_WX + CH, 0:CN], featn,
                     preferred_element_type=jnp.float32)
             + wpack_ref[_R_BS:_R_BS + CH, 0:1])                    # [CH, T*HW]

    wh_t = wpack_ref[_R_WH:_R_WH + CH, 0:CH]                        # [CH, CH]
    whd_row = wpack_ref[_R_HD:_R_HD + 1, 0:CH]                      # [1, CH]
    bhd = wpack_ref[_R_HD:_R_HD + 1, CH:CH + 1]                     # [1, 1]

    h = h0_ref[...]                                                 # [CH, HW]
    for t in range(T):       # static unroll over the short frame loop
        # lane-tile-aligned slice (t*HW multiple of 128) -> no relayout
        h = jnp.tanh(xproj[:, t * HW:(t + 1) * HW]
                     + jnp.dot(wh_t, h, preferred_element_type=jnp.float32))
        # head: 1x1 conv -> 1 channel as a tiny MXU matmul, written per frame
        # as a lane-dense [1, HW] row (no XLU reduce, no hs buffering).
        sal_ref[pl.ds(t, 1), :] = (
            jnp.dot(whd_row, h, preferred_element_type=jnp.float32) + bhd)

    hout_ref[...] = h        # lane-dense [CH, HW] final hidden state


def _im2col_t(x_nchw):
    """NCHW frames -> transposed, bias-augmented im2col [KPAD, T*HW]."""
    x = jnp.transpose(x_nchw, (0, 2, 3, 1)).astype(jnp.float32)      # NHWC
    x_pad = jnp.pad(x, ((0, 0), (1, 1), (1, 1), (0, 0)))             # [T,H+2,W+2,CIN]
    taps = [x_pad[:, dy:dy + H, dx:dx + W, :]
            for dy in range(3) for dx in range(3)]
    xcol = jnp.concatenate(taps, axis=-1).reshape(T * HW, K0)        # [T*HW, 36]
    ones = jnp.ones((T * HW, 1), jnp.float32)                        # backbone bias
    zpad = jnp.zeros((T * HW, KPAD - K0 - 1), jnp.float32)
    return jnp.concatenate([xcol, ones, zpad], axis=-1).T            # [KPAD, T*HW]


def _pack_params(params):
    """Pack all 9 parameter tensors (transposed) into one VMEM buffer."""
    (w33, bb, wn, bn, wx, wh, bs, whd, bhd) = params
    wpack = jnp.zeros((_R_TOT, KPAD), jnp.float32)
    wpack = wpack.at[_R_WBB:_R_WBB + CB, 0:K0].set(w33.reshape(K0, CB).T)
    wpack = wpack.at[_R_WBB:_R_WBB + CB, K0:K0 + 1].set(bb.T)        # bias column
    wpack = wpack.at[_R_WN:_R_WN + CN, 0:CB].set(wn.T)
    wpack = wpack.at[_R_WX:_R_WX + CH, 0:CN].set(wx.T)
    wpack = wpack.at[_R_WH:_R_WH + CH, 0:CH].set(wh.T)
    wpack = wpack.at[_R_BN:_R_BN + CN, 0:1].set(bn.T)
    wpack = wpack.at[_R_BS:_R_BS + CH, 0:1].set(bs.T)
    wpack = wpack.at[_R_HD:_R_HD + 1, 0:CH].set(whd.T)
    wpack = wpack.at[_R_HD:_R_HD + 1, CH:CH + 1].set(bhd)
    return wpack


@jax.jit
def _forward_jit(x_nchw, params, hidden_state):
    xcol_t = _im2col_t(x_nchw)                                       # [KPAD, T*HW]
    wpack = _pack_params(params)                                     # [200, 40]
    h0_t = hidden_state.astype(jnp.float32).T                        # [CH, HW]

    vmem = pl.BlockSpec(memory_space=pltpu.MemorySpace.VMEM)
    sal, h_out_t = pl.pallas_call(
        _sal_detector_kernel,
        out_shape=(jax.ShapeDtypeStruct((T, HW), jnp.float32),       # lane-dense
                   jax.ShapeDtypeStruct((CH, HW), jnp.float32)),     # lane-dense
        in_specs=[vmem,   # xcol_t [KPAD, T*HW]
                  vmem,   # wpack  [200, 40] (single weight DMA)
                  vmem],  # h0_t   [CH, HW]
        out_specs=(vmem, vmem),
    )(xcol_t, wpack, h0_t)

    # back to PyTorch-style NCHW saliency and [HW, CH] carried hidden state
    return sal.reshape(T, 1, H, W), h_out_t.T


def base_sal_detector_forward(x_nchw, params, hidden_state=None):
    """x_nchw: [T, CIN, H, W] float32.  Returns (sal [T,1,H,W], hidden [HW,CH])."""
    # train/eval flag of the PyTorch module is a no-op here (no dropout/BN).
    if hidden_state is None:
        hidden_state = jnp.zeros((HW, CH), jnp.float32)
    return _forward_jit(x_nchw, params, hidden_state)


def _reference_forward(x_nchw, params, hidden_state):
    """Pure-JAX reference mirroring the PyTorch forward_impl semantics."""
    (w33, bb, wn, bn, wx, wh, bs, whd, bhd) = params
    x = jnp.transpose(x_nchw, (0, 2, 3, 1)).astype(jnp.float32)
    x_pad = jnp.pad(x, ((0, 0), (1, 1), (1, 1), (0, 0)))
    frames = []
    h = hidden_state
    for t in range(T):
        xt = x_pad[t]
        acc = jnp.zeros((HW, CB), jnp.float32)
        for k in range(KTAPS):
            dy, dx = k // 3, k % 3
            acc = acc + xt[dy:dy + H, dx:dx + W, :].reshape(HW, CIN) @ w33[k]
        fb = jnp.maximum(acc + bb, 0.0)
        fn = jnp.maximum(fb @ wn + bn, 0.0)
        h = jnp.tanh(fn @ wx + h @ wh + bs)
        frames.append((h @ whd + bhd).reshape(H, W))
    sal = jnp.stack(frames, axis=0)[:, None]      # [T, 1, H, W]
    return sal, h


def _init_params(key):
    ks = jax.random.split(key, 9)
    s = 0.1
    return (
        s * jax.random.normal(ks[0], (KTAPS, CIN, CB), jnp.float32),
        s * jax.random.normal(ks[1], (1, CB), jnp.float32),
        s * jax.random.normal(ks[2], (CB, CN), jnp.float32),
        s * jax.random.normal(ks[3], (1, CN), jnp.float32),
        s * jax.random.normal(ks[4], (CN, CH), jnp.float32),
        s * jax.random.normal(ks[5], (CH, CH), jnp.float32),
        s * jax.random.normal(ks[6], (1, CH), jnp.float32),
        s * jax.random.normal(ks[7], (CH, 1), jnp.float32),
        s * jax.random.normal(ks[8], (1, 1), jnp.float32),
    )


if __name__ == "__main__":
    key = jax.random.PRNGKey(0)
    kx, kp = jax.random.split(key)
    x = jax.random.normal(kx, (T, CIN, H, W), jnp.float32)   # PyTorch-style NCHW
    params = _init_params(kp)
    h0 = jnp.zeros((HW, CH), jnp.float32)

    sal, h_final = base_sal_detector_forward(x, params, h0)
    jax.block_until_ready((sal, h_final))

    sal_ref, h_ref = _reference_forward(x, params, h0)
    assert sal.shape == (T, 1, H, W) and h_final.shape == (HW, CH)
    assert jnp.allclose(sal, sal_ref, atol=1e-4, rtol=1e-4)
    assert jnp.allclose(h_final, h_ref, atol=1e-4, rtol=1e-4)

    # TODO(synk): backbone/neck/sequencer/head are config-built in the original
    # repo; representative synthetic sub-modules are used here by necessity.
    # TODO(synk): at real frame sizes, add a "parallel" grid axis over pixel
    # tiles (the 1x1-conv recurrence is pixel-independent) for v7x's two
    # TensorCores, and size tiles against v7x's 64 MiB VMEM
    # (pltpu.CompilerParams(vmem_limit_bytes=...)).
    print("KERNEL_OK")
</pallas_src>

<mosaic_0001>
module attributes {stable_mosaic.version = 11 : i64} {
  func.func @_sal_detector_kernel(%arg0: memref<40x512xf32, #tpu.memory_space<vmem>>, %arg1: memref<200x40xf32, #tpu.memory_space<vmem>>, %arg2: memref<32x256xf32, #tpu.memory_space<vmem>>, %arg3: memref<2x256xf32, #tpu.memory_space<vmem>>, %arg4: memref<32x256xf32, #tpu.memory_space<vmem>>) attributes {dimension_semantics = [], scalar_prefetch = 0 : i64, scratch_operands = 0 : i64, tpu.core_type = #tpu.core_type<tc>} {
    %c0 = arith.constant 0 : index
    %c0_0 = arith.constant 0 : index
    %0 = vector.load %arg1[%c0, %c0_0] : memref<200x40xf32, #tpu.memory_space<vmem>>, vector<32x40xf32>
    %c0_1 = arith.constant 0 : index
    %c0_2 = arith.constant 0 : index
    %1 = vector.load %arg0[%c0_1, %c0_2] : memref<40x512xf32, #tpu.memory_space<vmem>>, vector<40x512xf32>
    %cst = arith.constant dense<0.000000e+00> : vector<32x512xf32>
    %2 = tpu.matmul %0, %1, %cst {dimension_numbers = #tpu.dot_dimension_numbers<[1], [0], [0], [1], [0, 0, 1, 1], [], []>} : vector<32x40xf32>, vector<40x512xf32>, vector<32x512xf32> -> vector<32x512xf32>
    %cst_3 = arith.constant 0.000000e+00 : f32
    %3 = vector.broadcast %cst_3 : f32 to vector<32x512xf32>
    %4 = arith.maximumf %2, %3 : vector<32x512xf32>
    %c32 = arith.constant 32 : index
    %c0_4 = arith.constant 0 : index
    %5 = vector.load %arg1[%c32, %c0_4] : memref<200x40xf32, #tpu.memory_space<vmem>>, vector<32x32xf32>
    %cst_5 = arith.constant dense<0.000000e+00> : vector<32x512xf32>
    %6 = tpu.matmul %5, %4, %cst_5 {dimension_numbers = #tpu.dot_dimension_numbers<[1], [0], [0], [1], [0, 0, 1, 1], [], []>} : vector<32x32xf32>, vector<32x512xf32>, vector<32x512xf32> -> vector<32x512xf32>
    %c128 = arith.constant 128 : index
    %c0_6 = arith.constant 0 : index
    %7 = vector.load %arg1[%c128, %c0_6] : memref<200x40xf32, #tpu.memory_space<vmem>>, vector<32x1xf32>
    %8 = vector.broadcast %7 : vector<32x1xf32> to vector<32x512xf32>
    %9 = arith.addf %6, %8 : vector<32x512xf32>
    %cst_7 = arith.constant 0.000000e+00 : f32
    %10 = vector.broadcast %cst_7 : f32 to vector<32x512xf32>
    %11 = arith.maximumf %9, %10 : vector<32x512xf32>
    %c64 = arith.constant 64 : index
    %c0_8 = arith.constant 0 : index
    %12 = vector.load %arg1[%c64, %c0_8] : memref<200x40xf32, #tpu.memory_space<vmem>>, vector<32x32xf32>
    %cst_9 = arith.constant dense<0.000000e+00> : vector<32x512xf32>
    %13 = tpu.matmul %12, %11, %cst_9 {dimension_numbers = #tpu.dot_dimension_numbers<[1], [0], [0], [1], [0, 0, 1, 1], [], []>} : vector<32x32xf32>, vector<32x512xf32>, vector<32x512xf32> -> vector<32x512xf32>
    %c160 = arith.constant 160 : index
    %c0_10 = arith.constant 0 : index
    %14 = vector.load %arg1[%c160, %c0_10] : memref<200x40xf32, #tpu.memory_space<vmem>>, vector<32x1xf32>
    %15 = vector.broadcast %14 : vector<32x1xf32> to vector<32x512xf32>
    %16 = arith.addf %13, %15 : vector<32x512xf32>
    %c96 = arith.constant 96 : index
    %c0_11 = arith.constant 0 : index
    %17 = vector.load %arg1[%c96, %c0_11] : memref<200x40xf32, #tpu.memory_space<vmem>>, vector<32x32xf32>
    %c192 = arith.constant 192 : index
    %c0_12 = arith.constant 0 : index
    %18 = vector.load %arg1[%c192, %c0_12] : memref<200x40xf32, #tpu.memory_space<vmem>>, vector<1x32xf32>
    %c192_13 = arith.constant 192 : index
    %c32_14 = arith.constant 32 : index
    %19 = vector.load %arg1[%c192_13, %c32_14] : memref<200x40xf32, #tpu.memory_space<vmem>>, vector<1x1xf32>
    %c0_15 = arith.constant 0 : index
    %c0_16 = arith.constant 0 : index
    %20 = vector.load %arg2[%c0_15, %c0_16] : memref<32x256xf32, #tpu.memory_space<vmem>>, vector<32x256xf32>
    %21 = vector.extract_strided_slice %16 {offsets = [0, 0], sizes = [32, 256], strides = [1, 1]} : vector<32x512xf32> to vector<32x256xf32>
    %cst_17 = arith.constant dense<0.000000e+00> : vector<32x256xf32>
    %22 = tpu.matmul %17, %20, %cst_17 {dimension_numbers = #tpu.dot_dimension_numbers<[1], [0], [0], [1], [0, 0, 1, 1], [], []>} : vector<32x32xf32>, vector<32x256xf32>, vector<32x256xf32> -> vector<32x256xf32>
    %23 = arith.addf %21, %22 : vector<32x256xf32>
    %24 = math.tanh %23 : vector<32x256xf32>
    %cst_18 = arith.constant dense<0.000000e+00> : vector<1x256xf32>
    %25 = tpu.matmul %18, %24, %cst_18 {dimension_numbers = #tpu.dot_dimension_numbers<[1], [0], [0], [1], [0, 0, 1, 1], [], []>} : vector<1x32xf32>, vector<32x256xf32>, vector<1x256xf32> -> vector<1x256xf32>
    %26 = vector.broadcast %19 : vector<1x1xf32> to vector<1x256xf32>
    %27 = arith.addf %25, %26 : vector<1x256xf32>
    %c0_19 = arith.constant 0 : index
    %c0_20 = arith.constant 0 : index
    %28 = vector.load %arg3[%c0_19, %c0_20] : memref<2x256xf32, #tpu.memory_space<vmem>>, vector<1x256xf32>
    tpu.vector_store %arg3[%c0_19, %c0_20], %27 {strides = array<i32>} : memref<2x256xf32, #tpu.memory_space<vmem>>, vector<1x256xf32>,
    %29 = vector.extract_strided_slice %16 {offsets = [0, 256], sizes = [32, 256], strides = [1, 1]} : vector<32x512xf32> to vector<32x256xf32>
    %cst_21 = arith.constant dense<0.000000e+00> : vector<32x256xf32>
    %30 = tpu.matmul %17, %24, %cst_21 {dimension_numbers = #tpu.dot_dimension_numbers<[1], [0], [0], [1], [0, 0, 1, 1], [], []>} : vector<32x32xf32>, vector<32x256xf32>, vector<32x256xf32> -> vector<32x256xf32>
    %31 = arith.addf %29, %30 : vector<32x256xf32>
    %32 = math.tanh %31 : vector<32x256xf32>
    %cst_22 = arith.constant dense<0.000000e+00> : vector<1x256xf32>
    %33 = tpu.matmul %18, %32, %cst_22 {dimension_numbers = #tpu.dot_dimension_numbers<[1], [0], [0], [1], [0, 0, 1, 1], [], []>} : vector<1x32xf32>, vector<32x256xf32>, vector<1x256xf32> -> vector<1x256xf32>
    %34 = vector.broadcast %19 : vector<1x1xf32> to vector<1x256xf32>
    %35 = arith.addf %33, %34 : vector<1x256xf32>
    %c1 = arith.constant 1 : index
    %c0_23 = arith.constant 0 : index
    %36 = vector.load %arg3[%c1, %c0_23] : memref<2x256xf32, #tpu.memory_space<vmem>>, vector<1x256xf32>
    tpu.vector_store %arg3[%c1, %c0_23], %35 {strides = array<i32>} : memref<2x256xf32, #tpu.memory_space<vmem>>, vector<1x256xf32>,
    %c0_24 = arith.constant 0 : index
    %c0_25 = arith.constant 0 : index
    %37 = vector.load %arg4[%c0_24, %c0_25] : memref<32x256xf32, #tpu.memory_space<vmem>>, vector<32x256xf32>
    tpu.vector_store %arg4[%c0_24, %c0_25], %32 {strides = array<i32>} : memref<32x256xf32, #tpu.memory_space<vmem>>, vector<32x256xf32>,
    return
  }
}

</mosaic_0001>

<llo_original>
// kernel: _forward_jit.1
$region0: #{_forward_jit.1}
  #allocation0 [shape = 'u32[]', space=smem, size = 0x4, offset = 0x4, fixed_abs, tag = 'smem constant byte address 0x4 - core index']
  #allocation1 [shape = 'u32[144,128]{1,0:T(1,128)}', space=vmem, size = 0x12000, scoped, tag = 'internal scratch']
  %s0 = inlined_call_operand.vmem [shape: f32[40,512], index: 0, kind: input, shape index: {}]
  %s1 = inlined_call_operand.vmem [shape: f32[200,40], index: 1, kind: input, shape index: {}]
  %s2 = inlined_call_operand.vmem [shape: f32[32,256], index: 2, kind: input, shape index: {}]
  %s3 = inlined_call_operand.vmem [shape: f32[2,256], index: 3, kind: output, shape index: {0}]
  %s4 = inlined_call_operand.hbm [shape: f32[32,256], index: 4, kind: output, shape index: {1}]
  %5 = xla_tuple %s3, %s4
  %s6 = sld [smem:[#allocation0]]
  $region30: #{_forward_jit.1} parent=0
    _
  %s8 = ssub.s32 1, %s6
  %s9 = scalar_select 0, %s8, %s6
  $region1: #{_forward_jit.1} parent=0
    #allocation2 [shape = 'u8[32768]{0}', space=vmem, size = 0x8000, scoped, tag = 'output window, operand 1, single buffered']
    #allocation3 [shape = 's32[1]{0}', space=sflag, size = 0x4, scoped, tag = 'scoped memory for _forward_jit.1']
    %10 = vsyncpa [#allocation3], 0
    // Predicated region
    $region2: #{_forward_jit.1} parent=1 // pred_check
      _
    $region3: #{_forward_jit.1} parent=1 // pred_check_branch
      %12 = sbr.rel (0) target = $region5
    $region4: #{_forward_jit.1} parent=1 // pred_region
      _
    $region5: #{_forward_jit.1} parent=1 // pred_fallthru
      _
    // Predicated region
    $region6: #{_forward_jit.1} parent=1 // pred_check
      _
    $region7: #{_forward_jit.1} parent=1 // pred_check_branch
      %14 = sbr.rel (0) target = $region9
    $region8: #{_forward_jit.1} parent=1 // pred_region
      _
    $region9: #{_forward_jit.1} parent=1 // pred_fallthru
      _
    // Predicated region
    $region10: #{_forward_jit.1} parent=1 // pred_check
      _
    $region11: #{_forward_jit.1} parent=1 // pred_check_branch
      %16 = sbr.rel (0) target = $region13
    $region12: #{_forward_jit.1} parent=1 // pred_region
      _
    $region13: #{_forward_jit.1} parent=1 // pred_fallthru
      _
    %v17 = vld [vmem:[%s1] sm:$0xff]
    %v18 = vld [vmem:[%s1 + $0x8] sm:$0xff]
    %v19 = vld [vmem:[%s1 + $0x10] sm:$0xff]
    %v20 = vld [vmem:[%s1 + $0x18] sm:$0xff]
    %v21 = vld [vmem:[%s0] sm:$0xff]
    %v22 = vld [vmem:[%s0 + $0x8] sm:$0xff]
    %v23 = vld [vmem:[%s0 + $0x10] sm:$0xff]
    %v24 = vld [vmem:[%s0 + $0x18] sm:$0xff]
    %v25 = vld [vmem:[%s0 + $0x20] sm:$0xff]
    %v26 = vld [vmem:[%s0 + $0x28] sm:$0xff]
    %v27 = vld [vmem:[%s0 + $0x30] sm:$0xff]
    %v28 = vld [vmem:[%s0 + $0x38] sm:$0xff]
    %v29 = vld [vmem:[%s0 + $0x40] sm:$0xff]
    %v30 = vld [vmem:[%s0 + $0x48] sm:$0xff]
    %v31 = vld [vmem:[%s0 + $0x50] sm:$0xff]
    %v32 = vld [vmem:[%s0 + $0x58] sm:$0xff]
    %v33 = vld [vmem:[%s0 + $0x60] sm:$0xff]
    %v34 = vld [vmem:[%s0 + $0x68] sm:$0xff]
    %v35 = vld [vmem:[%s0 + $0x70] sm:$0xff]
    %v36 = vld [vmem:[%s0 + $0x78] sm:$0xff]
    %v37 = vld [vmem:[%s0 + $0x80] sm:$0xff]
    %v38 = vld [vmem:[%s0 + $0x88] sm:$0xff]
    %v39 = vld [vmem:[%s0 + $0x90] sm:$0xff]
    %v40 = vld [vmem:[%s0 + $0x98] sm:$0xff]
    %vm41 = vcmask 326656
    %v43 = vsel %vm41, %v17, 0
    %v46 = vsel %vm41, %v18, 0
    %v49 = vsel %vm41, %v19, 0
    %v52 = vsel %vm41, %v20, 0
    %54 = vmatprep.subr.mxu0 0.0
    %55 = vmatpush1.msra.mxu0 0.0
    %56 = vmatprep.subr.mxu0 0.0
    %57 = vmatpush1.msra.mxu0 0.0
    %58 = vmatprep.subr.mxu0 0.0
    %59 = vmatpush1.msra.mxu0 0.0
    %60 = vmatprep.subr.mxu0 0.0
    %61 = vmatpush1.msra.mxu0 0.0
    %62 = vmatprep.subr.mxu0 0.0
    %63 = vmatpush1.msra.mxu0 0.0
    %64 = vmatprep.subr.mxu0 0.0
    %65 = vmatpush1.msra.mxu0 0.0
    %66 = vmatprep.subr.mxu0 0.0
    %67 = vmatpush1.msra.mxu0 0.0
    %68 = vmatprep.subr.mxu0 0.0
    %69 = vmatpush1.msra.mxu0 0.0
    %70 = vmatprep.subr.mxu0 0.0
    %71 = vmatpush1.msra.mxu0 0.0
    %72 = vmatprep.subr.mxu0 0.0
    %73 = vmatpush1.msra.mxu0 0.0
    %74 = vmatprep.subr.mxu0 0.0
    %75 = vmatpush1.msra.mxu0 0.0
    %76 = vmatprep.subr.mxu0 %v38
    %77 = vmatpush1.msra.mxu0 %v37
    %78 = vmatprep.subr.mxu0 %v34
    %79 = vmatpush1.msra.mxu0 %v33
    %80 = vmatprep.subr.mxu0 %v30
    %81 = vmatpush1.msra.mxu0 %v29
    %82 = vmatprep.subr.mxu0 %v26
    %83 = vmatpush1.msra.mxu0 %v25
    %84 = vmatprep.subr.mxu0 %v22
    %85 = vmatpush1.msra.mxu0 %v21
    %86 = vmatprep.subr.mxu0 0.0
    %87 = vmatpush2.msra.mxu0 0.0
    %88 = vmatprep.subr.mxu0 0.0
    %89 = vmatpush2.msra.mxu0 0.0
    %90 = vmatprep.subr.mxu0 0.0
    %91 = vmatpush2.msra.mxu0 0.0
    %92 = vmatprep.subr.mxu0 0.0
    %93 = vmatpush2.msra.mxu0 0.0
    %94 = vmatprep.subr.mxu0 0.0
    %95 = vmatpush2.msra.mxu0 0.0
    %96 = vmatprep.subr.mxu0 0.0
    %97 = vmatpush2.msra.mxu0 0.0
    %98 = vmatprep.subr.mxu0 0.0
    %99 = vmatpush2.msra.mxu0 0.0
    %100 = vmatprep.subr.mxu0 0.0
    %101 = vmatpush2.msra.mxu0 0.0
    %102 = vmatprep.subr.mxu0 0.0
    %103 = vmatpush2.msra.mxu0 0.0
    %104 = vmatprep.subr.mxu0 0.0
    %105 = vmatpush2.msra.mxu0 0.0
    %106 = vmatprep.subr.mxu0 0.0
    %107 = vmatpush2.msra.mxu0 0.0
    %108 = vmatprep.subr.mxu0 0.0
    %109 = vmatpush2.msra.mxu0 0.0
    %110 = vmatprep.subr.mxu0 0.0
    %111 = vmatpush2.msra.mxu0 0.0
    %112 = vmatprep.subr.mxu0 0.0
    %113 = vmatpush2.msra.mxu0 0.0
    %114 = vmatprep.subr.mxu0 0.0
    %115 = vmatpush2.msra.mxu0 0.0
    %116 = vmatprep.subr.mxu0 0.0
    %117 = vmatpush2.msra.mxu0 0.0
    %118 = vmatprep.mubr.f32.mxu0 0.0
    %119 = vmatmul.mubr.f32.gmra.mxu0 %v43
    %v120 = vpop.f32.mrf.mxu0
    %v121 = vadd.f32 0.0, %v120
    %v122 = vpop.f32.mrf.mxu0
    %v123 = vadd.f32 0.0, %v122
    %124 = vmatprep.mubr.f32.mxu0 0.0
    %125 = vmatmul.mubr.f32.gmra.mxu0 %v46
    %v126 = vpop.f32.mrf.mxu0
    %v127 = vadd.f32 0.0, %v126
    %v128 = vpop.f32.mrf.mxu0
    %v129 = vadd.f32 0.0, %v128
    %130 = vmatprep.mubr.f32.mxu0 0.0
    %131 = vmatmul.mubr.f32.gmra.mxu0 %v49
    %v132 = vpop.f32.mrf.mxu0
    %v133 = vadd.f32 0.0, %v132
    %v134 = vpop.f32.mrf.mxu0
    %v135 = vadd.f32 0.0, %v134
    %136 = vmatprep.mubr.f32.mxu0 0.0
    %137 = vmatmul.mubr.f32.gmra.mxu0 %v52
    %v138 = vpop.f32.mrf.mxu0
    %v139 = vadd.f32 0.0, %v138
    %v140 = vpop.f32.mrf.mxu0
    %v141 = vadd.f32 0.0, %v140
    %142 = vdwg.mxu0
    %143 = vmatprep.subr.mxu0 0.0
    %144 = vmatpush1.msra.mxu0 0.0
    %145 = vmatprep.subr.mxu0 0.0
    %146 = vmatpush1.msra.mxu0 0.0
    %147 = vmatprep.subr.mxu0 0.0
    %148 = vmatpush1.msra.mxu0 0.0
    %149 = vmatprep.subr.mxu0 0.0
    %150 = vmatpush1.msra.mxu0 0.0
    %151 = vmatprep.subr.mxu0 0.0
    %152 = vmatpush1.msra.mxu0 0.0
    %153 = vmatprep.subr.mxu0 0.0
    %154 = vmatpush1.msra.mxu0 0.0
    %155 = vmatprep.subr.mxu0 0.0
    %156 = vmatpush1.msra.mxu0 0.0
    %157 = vmatprep.subr.mxu0 0.0
    %158 = vmatpush1.msra.mxu0 0.0
    %159 = vmatprep.subr.mxu0 0.0
    %160 = vmatpush1.msra.mxu0 0.0
    %161 = vmatprep.subr.mxu0 0.0
    %162 = vmatpush1.msra.mxu0 0.0
    %163 = vmatprep.subr.mxu0 0.0
    %164 = vmatpush1.msra.mxu0 0.0
    %165 = vmatprep.subr.mxu0 %v40
    %166 = vmatpush1.msra.mxu0 %v39
    %167 = vmatprep.subr.mxu0 %v36
    %168 = vmatpush1.msra.mxu0 %v35
    %169 = vmatprep.subr.mxu0 %v32
    %170 = vmatpush1.msra.mxu0 %v31
    %171 = vmatprep.subr.mxu0 %v28
    %172 = vmatpush1.msra.mxu0 %v27
    %173 = vmatprep.subr.mxu0 %v24
    %174 = vmatpush1.msra.mxu0 %v23
    %175 = vmatprep.subr.mxu0 0.0
    %176 = vmatpush2.msra.mxu0 0.0
    %177 = vmatprep.subr.mxu0 0.0
    %178 = vmatpush2.msra.mxu0 0.0
    %179 = vmatprep.subr.mxu0 0.0
    %180 = vmatpush2.msra.mxu0 0.0
    %181 = vmatprep.subr.mxu0 0.0
    %182 = vmatpush2.msra.mxu0 0.0
    %183 = vmatprep.subr.mxu0 0.0
    %184 = vmatpush2.msra.mxu0 0.0
    %185 = vmatprep.subr.mxu0 0.0
    %186 = vmatpush2.msra.mxu0 0.0
    %187 = vmatprep.subr.mxu0 0.0
    %188 = vmatpush2.msra.mxu0 0.0
    %189 = vmatprep.subr.mxu0 0.0
    %190 = vmatpush2.msra.mxu0 0.0
    %191 = vmatprep.subr.mxu0 0.0
    %192 = vmatpush2.msra.mxu0 0.0
    %193 = vmatprep.subr.mxu0 0.0
    %194 = vmatpush2.msra.mxu0 0.0
    %195 = vmatprep.subr.mxu0 0.0
    %196 = vmatpush2.msra.mxu0 0.0
    %197 = vmatprep.subr.mxu0 0.0
    %198 = vmatpush2.msra.mxu0 0.0
    %199 = vmatprep.subr.mxu0 0.0
    %200 = vmatpush2.msra.mxu0 0.0
    %201 = vmatprep.subr.mxu0 0.0
    %202 = vmatpush2.msra.mxu0 0.0
    %203 = vmatprep.subr.mxu0 0.0
    %204 = vmatpush2.msra.mxu0 0.0
    %205 = vmatprep.subr.mxu0 0.0
    %206 = vmatpush2.msra.mxu0 0.0
    %207 = vmatprep.mubr.f32.mxu0 0.0
    %208 = vmatmul.mubr.f32.gmra.mxu0 %v43
    %v209 = vpop.f32.mrf.mxu0
    %v210 = vadd.f32 0.0, %v209
    %v211 = vpop.f32.mrf.mxu0
    %v212 = vadd.f32 0.0, %v211
    %213 = vmatprep.mubr.f32.mxu0 0.0
    %214 = vmatmul.mubr.f32.gmra.mxu0 %v46
    %v215 = vpop.f32.mrf.mxu0
    %v216 = vadd.f32 0.0, %v215
    %v217 = vpop.f32.mrf.mxu0
    %v218 = vadd.f32 0.0, %v217
    %219 = vmatprep.mubr.f32.mxu0 0.0
    %220 = vmatmul.mubr.f32.gmra.mxu0 %v49
    %v221 = vpop.f32.mrf.mxu0
    %v222 = vadd.f32 0.0, %v221
    %v223 = vpop.f32.mrf.mxu0
    %v224 = vadd.f32 0.0, %v223
    %225 = vmatprep.mubr.f32.mxu0 0.0
    %226 = vmatmul.mubr.f32.gmra.mxu0 %v52
    %v227 = vpop.f32.mrf.mxu0
    %v228 = vadd.f32 0.0, %v227
    %v229 = vpop.f32.mrf.mxu0
    %v230 = vadd.f32 0.0, %v229
    %231 = vdwg.mxu0
    %v232 = vmax.f32 %v121, 0.0
    %v233 = vmax.f32 %v123, 0.0
    %v234 = vmax.f32 %v210, 0.0
    %v235 = vmax.f32 %v212, 0.0
    %v236 = vmax.f32 %v127, 0.0
    %v237 = vmax.f32 %v129, 0.0
    %v238 = vmax.f32 %v216, 0.0
    %v239 = vmax.f32 %v218, 0.0
    %v240 = vmax.f32 %v133, 0.0
    %v241 = vmax.f32 %v135, 0.0
    %v242 = vmax.f32 %v222, 0.0
    %v243 = vmax.f32 %v224, 0.0
    %v244 = vmax.f32 %v139, 0.0
    %v245 = vmax.f32 %v141, 0.0
    %v246 = vmax.f32 %v228, 0.0
    %v247 = vmax.f32 %v230, 0.0
    %v248 = vld [vmem:[%s1 + $0x20] sm:$0xff]
    %v249 = vld [vmem:[%s1 + $0x28] sm:$0xff]
    %v250 = vld [vmem:[%s1 + $0x30] sm:$0xff]
    %v251 = vld [vmem:[%s1 + $0x38] sm:$0xff]
    %v252 = vld [vmem:[%s1 + $0x80] sm:$0xff]
    %v253 = vld [vmem:[%s1 + $0x88] sm:$0xff]
    %v254 = vld [vmem:[%s1 + $0x90] sm:$0xff]
    %v255 = vld [vmem:[%s1 + $0x98] sm:$0xff]
    %257 = vset.pattern.permute.xlu0 0
    %258 = vperm.xlu0 %257, %v252
    %v259 = vpop.permute.xlu0 %258
    %262 = vset.pattern.permute.xlu0 0
    %263 = vperm.xlu0 %262, %v253
    %v264 = vpop.permute.xlu0 %263
    %267 = vset.pattern.permute.xlu0 0
    %268 = vperm.xlu0 %267, %v254
    %v269 = vpop.permute.xlu0 %268
    %272 = vset.pattern.permute.xlu0 0
    %273 = vperm.xlu0 %272, %v255
    %v274 = vpop.permute.xlu0 %273
    %vm276 = vcmask 261120
    %v278 = vsel %vm276, %v248, 0
    %v281 = vsel %vm276, %v249, 0
    %v284 = vsel %vm276, %v250, 0
    %v287 = vsel %vm276, %v251, 0
    %289 = vmatprep.subr.mxu0 0.0
    %290 = vmatpush1.msra.mxu0 0.0
    %291 = vmatprep.subr.mxu0 0.0
    %292 = vmatpush1.msra.mxu0 0.0
    %293 = vmatprep.subr.mxu0 0.0
    %294 = vmatpush1.msra.mxu0 0.0
    %295 = vmatprep.subr.mxu0 0.0
    %296 = vmatpush1.msra.mxu0 0.0
    %297 = vmatprep.subr.mxu0 0.0
    %298 = vmatpush1.msra.mxu0 0.0
    %299 = vmatprep.subr.mxu0 0.0
    %300 = vmatpush1.msra.mxu0 0.0
    %301 = vmatprep.subr.mxu0 0.0
    %302 = vmatpush1.msra.mxu0 0.0
    %303 = vmatprep.subr.mxu0 0.0
    %304 = vmatpush1.msra.mxu0 0.0
    %305 = vmatprep.subr.mxu0 0.0
    %306 = vmatpush1.msra.mxu0 0.0
    %307 = vmatprep.subr.mxu0 0.0
    %308 = vmatpush1.msra.mxu0 0.0
    %309 = vmatprep.subr.mxu0 0.0
    %310 = vmatpush1.msra.mxu0 0.0
    %311 = vmatprep.subr.mxu0 0.0
    %312 = vmatpush1.msra.mxu0 0.0
    %313 = vmatprep.subr.mxu0 %v245
    %314 = vmatpush1.msra.mxu0 %v244
    %315 = vmatprep.subr.mxu0 %v241
    %316 = vmatpush1.msra.mxu0 %v240
    %317 = vmatprep.subr.mxu0 %v237
    %318 = vmatpush1.msra.mxu0 %v236
    %319 = vmatprep.subr.mxu0 %v233
    %320 = vmatpush1.msra.mxu0 %v232
    %321 = vmatprep.subr.mxu0 0.0
    %322 = vmatpush2.msra.mxu0 0.0
    %323 = vmatprep.subr.mxu0 0.0
    %324 = vmatpush2.msra.mxu0 0.0
    %325 = vmatprep.subr.mxu0 0.0
    %326 = vmatpush2.msra.mxu0 0.0
    %327 = vmatprep.subr.mxu0 0.0
    %328 = vmatpush2.msra.mxu0 0.0
    %329 = vmatprep.subr.mxu0 0.0
    %330 = vmatpush2.msra.mxu0 0.0
    %331 = vmatprep.subr.mxu0 0.0
    %332 = vmatpush2.msra.mxu0 0.0
    %333 = vmatprep.subr.mxu0 0.0
    %334 = vmatpush2.msra.mxu0 0.0
    %335 = vmatprep.subr.mxu0 0.0
    %336 = vmatpush2.msra.mxu0 0.0
    %337 = vmatprep.subr.mxu0 0.0
    %338 = vmatpush2.msra.mxu0 0.0
    %339 = vmatprep.subr.mxu0 0.0
    %340 = vmatpush2.msra.mxu0 0.0
    %341 = vmatprep.subr.mxu0 0.0
    %342 = vmatpush2.msra.mxu0 0.0
    %343 = vmatprep.subr.mxu0 0.0
    %344 = vmatpush2.msra.mxu0 0.0
    %345 = vmatprep.subr.mxu0 0.0
    %346 = vmatpush2.msra.mxu0 0.0
    %347 = vmatprep.subr.mxu0 0.0
    %348 = vmatpush2.msra.mxu0 0.0
    %349 = vmatprep.subr.mxu0 0.0
    %350 = vmatpush2.msra.mxu0 0.0
    %351 = vmatprep.subr.mxu0 0.0
    %352 = vmatpush2.msra.mxu0 0.0
    %353 = vmatprep.mubr.f32.mxu0 0.0
    %354 = vmatmul.mubr.f32.gmra.mxu0 %v278
    %v355 = vpop.f32.mrf.mxu0
    %v356 = vadd.f32 %v259, %v355
    %v357 = vpop.f32.mrf.mxu0
    %v358 = vadd.f32 %v259, %v357
    %359 = vmatprep.mubr.f32.mxu0 0.0
    %360 = vmatmul.mubr.f32.gmra.mxu0 %v281
    %v361 = vpop.f32.mrf.mxu0
    %v362 = vadd.f32 %v264, %v361
    %v363 = vpop.f32.mrf.mxu0
    %v364 = vadd.f32 %v264, %v363
    %365 = vmatprep.mubr.f32.mxu0 0.0
    %366 = vmatmul.mubr.f32.gmra.mxu0 %v284
    %v367 = vpop.f32.mrf.mxu0
    %v368 = vadd.f32 %v269, %v367
    %v369 = vpop.f32.mrf.mxu0
    %v370 = vadd.f32 %v269, %v369
    %371 = vmatprep.mubr.f32.mxu0 0.0
    %372 = vmatmul.mubr.f32.gmra.mxu0 %v287
    %v373 = vpop.f32.mrf.mxu0
    %v374 = vadd.f32 %v274, %v373
    %v375 = vpop.f32.mrf.mxu0
    %v376 = vadd.f32 %v274, %v375
    %377 = vdwg.mxu0
    %378 = vmatprep.subr.mxu0 0.0
    %379 = vmatpush1.msra.mxu0 0.0
    %380 = vmatprep.subr.mxu0 0.0
    %381 = vmatpush1.msra.mxu0 0.0
    %382 = vmatprep.subr.mxu0 0.0
    %383 = vmatpush1.msra.mxu0 0.0
    %384 = vmatprep.subr.mxu0 0.0
    %385 = vmatpush1.msra.mxu0 0.0
    %386 = vmatprep.subr.mxu0 0.0
    %387 = vmatpush1.msra.mxu0 0.0
    %388 = vmatprep.subr.mxu0 0.0
    %389 = vmatpush1.msra.mxu0 0.0
    %390 = vmatprep.subr.mxu0 0.0
    %391 = vmatpush1.msra.mxu0 0.0
    %392 = vmatprep.subr.mxu0 0.0
    %393 = vmatpush1.msra.mxu0 0.0
    %394 = vmatprep.subr.mxu0 0.0
    %395 = vmatpush1.msra.mxu0 0.0
    %396 = vmatprep.subr.mxu0 0.0
    %397 = vmatpush1.msra.mxu0 0.0
    %398 = vmatprep.subr.mxu0 0.0
    %399 = vmatpush1.msra.mxu0 0.0
    %400 = vmatprep.subr.mxu0 0.0
    %401 = vmatpush1.msra.mxu0 0.0
    %402 = vmatprep.subr.mxu0 %v247
    %403 = vmatpush1.msra.mxu0 %v246
    %404 = vmatprep.subr.mxu0 %v243
    %405 = vmatpush1.msra.mxu0 %v242
    %406 = vmatprep.subr.mxu0 %v239
    %407 = vmatpush1.msra.mxu0 %v238
    %408 = vmatprep.subr.mxu0 %v235
    %409 = vmatpush1.msra.mxu0 %v234
    %410 = vmatprep.subr.mxu0 0.0
    %411 = vmatpush2.msra.mxu0 0.0
    %412 = vmatprep.subr.mxu0 0.0
    %413 = vmatpush2.msra.mxu0 0.0
    %414 = vmatprep.subr.mxu0 0.0
    %415 = vmatpush2.msra.mxu0 0.0
    %416 = vmatprep.subr.mxu0 0.0
    %417 = vmatpush2.msra.mxu0 0.0
    %418 = vmatprep.subr.mxu0 0.0
    %419 = vmatpush2.msra.mxu0 0.0
    %420 = vmatprep.subr.mxu0 0.0
    %421 = vmatpush2.msra.mxu0 0.0
    %422 = vmatprep.subr.mxu0 0.0
    %423 = vmatpush2.msra.mxu0 0.0
    %424 = vmatprep.subr.mxu0 0.0
    %425 = vmatpush2.msra.mxu0 0.0
    %426 = vmatprep.subr.mxu0 0.0
    %427 = vmatpush2.msra.mxu0 0.0
    %428 = vmatprep.subr.mxu0 0.0
    %429 = vmatpush2.msra.mxu0 0.0
    %430 = vmatprep.subr.mxu0 0.0
    %431 = vmatpush2.msra.mxu0 0.0
    %432 = vmatprep.subr.mxu0 0.0
    %433 = vmatpush2.msra.mxu0 0.0
    %434 = vmatprep.subr.mxu0 0.0
    %435 = vmatpush2.msra.mxu0 0.0
    %436 = vmatprep.subr.mxu0 0.0
    %437 = vmatpush2.msra.mxu0 0.0
    %438 = vmatprep.subr.mxu0 0.0
    %439 = vmatpush2.msra.mxu0 0.0
    %440 = vmatprep.subr.mxu0 0.0
    %441 = vmatpush2.msra.mxu0 0.0
    %442 = vmatprep.mubr.f32.mxu0 0.0
    %443 = vmatmul.mubr.f32.gmra.mxu0 %v278
    %v444 = vpop.f32.mrf.mxu0
    %v445 = vadd.f32 %v259, %v444
    %v446 = vpop.f32.mrf.mxu0
    %v447 = vadd.f32 %v259, %v446
    %448 = vmatprep.mubr.f32.mxu0 0.0
    %449 = vmatmul.mubr.f32.gmra.mxu0 %v281
    %v450 = vpop.f32.mrf.mxu0
    %v451 = vadd.f32 %v264, %v450
    %v452 = vpop.f32.mrf.mxu0
    %v453 = vadd.f32 %v264, %v452
    %454 = vmatprep.mubr.f32.mxu0 0.0
    %455 = vmatmul.mubr.f32.gmra.mxu0 %v284
    %v456 = vpop.f32.mrf.mxu0
    %v457 = vadd.f32 %v269, %v456
    %v458 = vpop.f32.mrf.mxu0
    %v459 = vadd.f32 %v269, %v458
    %460 = vmatprep.mubr.f32.mxu0 0.0
    %461 = vmatmul.mubr.f32.gmra.mxu0 %v287
    %v462 = vpop.f32.mrf.mxu0
    %v463 = vadd.f32 %v274, %v462
    %v464 = vpop.f32.mrf.mxu0
    %v465 = vadd.f32 %v274, %v464
    %466 = vdwg.mxu0
    %v467 = vmax.f32 %v356, 0.0
    %v468 = vmax.f32 %v358, 0.0
    %v469 = vmax.f32 %v445, 0.0
    %v470 = vmax.f32 %v447, 0.0
    %v471 = vmax.f32 %v362, 0.0
    %v472 = vmax.f32 %v364, 0.0
    %v473 = vmax.f32 %v451, 0.0
    %v474 = vmax.f32 %v453, 0.0
    %v475 = vmax.f32 %v368, 0.0
    %v476 = vmax.f32 %v370, 0.0
    %v477 = vmax.f32 %v457, 0.0
    %v478 = vmax.f32 %v459, 0.0
    %v479 = vmax.f32 %v374, 0.0
    %v480 = vmax.f32 %v376, 0.0
    %v481 = vmax.f32 %v463, 0.0
    %v482 = vmax.f32 %v465, 0.0
    %v483 = vld [vmem:[%s1 + $0x40] sm:$0xff]
    %v484 = vld [vmem:[%s1 + $0x48] sm:$0xff]
    %v485 = vld [vmem:[%s1 + $0x50] sm:$0xff]
    %v486 = vld [vmem:[%s1 + $0x58] sm:$0xff]
    %v487 = vld [vmem:[%s1 + $0xa0] sm:$0xff]
    %v488 = vld [vmem:[%s1 + $0xa8] sm:$0xff]
    %v489 = vld [vmem:[%s1 + $0xb0] sm:$0xff]
    %v490 = vld [vmem:[%s1 + $0xb8] sm:$0xff]
    %492 = vset.pattern.permute.xlu0 0
    %493 = vperm.xlu0 %492, %v487
    %v494 = vpop.permute.xlu0 %493
    %497 = vset.pattern.permute.xlu0 0
    %498 = vperm.xlu0 %497, %v488
    %v499 = vpop.permute.xlu0 %498
    %502 = vset.pattern.permute.xlu0 0
    %503 = vperm.xlu0 %502, %v489
    %v504 = vpop.permute.xlu0 %503
    %507 = vset.pattern.permute.xlu0 0
    %508 = vperm.xlu0 %507, %v490
    %v509 = vpop.permute.xlu0 %508
    %v512 = vsel %vm276, %v483, 0
    %v515 = vsel %vm276, %v484, 0
    %v518 = vsel %vm276, %v485, 0
    %v521 = vsel %vm276, %v486, 0
    %523 = vmatprep.subr.mxu0 0.0
    %524 = vmatpush1.msra.mxu0 0.0
    %525 = vmatprep.subr.mxu0 0.0
    %526 = vmatpush1.msra.mxu0 0.0
    %527 = vmatprep.subr.mxu0 0.0
    %528 = vmatpush1.msra.mxu0 0.0
    %529 = vmatprep.subr.mxu0 0.0
    %530 = vmatpush1.msra.mxu0 0.0
    %531 = vmatprep.subr.mxu0 0.0
    %532 = vmatpush1.msra.mxu0 0.0
    %533 = vmatprep.subr.mxu0 0.0
    %534 = vmatpush1.msra.mxu0 0.0
    %535 = vmatprep.subr.mxu0 0.0
    %536 = vmatpush1.msra.mxu0 0.0
    %537 = vmatprep.subr.mxu0 0.0
    %538 = vmatpush1.msra.mxu0 0.0
    %539 = vmatprep.subr.mxu0 0.0
    %540 = vmatpush1.msra.mxu0 0.0
    %541 = vmatprep.subr.mxu0 0.0
    %542 = vmatpush1.msra.mxu0 0.0
    %543 = vmatprep.subr.mxu0 0.0
    %544 = vmatpush1.msra.mxu0 0.0
    %545 = vmatprep.subr.mxu0 0.0
    %546 = vmatpush1.msra.mxu0 0.0
    %547 = vmatprep.subr.mxu0 %v480
    %548 = vmatpush1.msra.mxu0 %v479
    %549 = vmatprep.subr.mxu0 %v476
    %550 = vmatpush1.msra.mxu0 %v475
    %551 = vmatprep.subr.mxu0 %v472
    %552 = vmatpush1.msra.mxu0 %v471
    %553 = vmatprep.subr.mxu0 %v468
    %554 = vmatpush1.msra.mxu0 %v467
    %555 = vmatprep.subr.mxu0 0.0
    %556 = vmatpush2.msra.mxu0 0.0
    %557 = vmatprep.subr.mxu0 0.0
    %558 = vmatpush2.msra.mxu0 0.0
    %559 = vmatprep.subr.mxu0 0.0
    %560 = vmatpush2.msra.mxu0 0.0
    %561 = vmatprep.subr.mxu0 0.0
    %562 = vmatpush2.msra.mxu0 0.0
    %563 = vmatprep.subr.mxu0 0.0
    %564 = vmatpush2.msra.mxu0 0.0
    %565 = vmatprep.subr.mxu0 0.0
    %566 = vmatpush2.msra.mxu0 0.0
    %567 = vmatprep.subr.mxu0 0.0
    %568 = vmatpush2.msra.mxu0 0.0
    %569 = vmatprep.subr.mxu0 0.0
    %570 = vmatpush2.msra.mxu0 0.0
    %571 = vmatprep.subr.mxu0 0.0
    %572 = vmatpush2.msra.mxu0 0.0
    %573 = vmatprep.subr.mxu0 0.0
    %574 = vmatpush2.msra.mxu0 0.0
    %575 = vmatprep.subr.mxu0 0.0
    %576 = vmatpush2.msra.mxu0 0.0
    %577 = vmatprep.subr.mxu0 0.0
    %578 = vmatpush2.msra.mxu0 0.0
    %579 = vmatprep.subr.mxu0 0.0
    %580 = vmatpush2.msra.mxu0 0.0
    %581 = vmatprep.subr.mxu0 0.0
    %582 = vmatpush2.msra.mxu0 0.0
    %583 = vmatprep.subr.mxu0 0.0
    %584 = vmatpush2.msra.mxu0 0.0
    %585 = vmatprep.subr.mxu0 0.0
    %586 = vmatpush2.msra.mxu0 0.0
    %587 = vmatprep.mubr.f32.mxu0 0.0
    %588 = vmatmul.mubr.f32.gmra.mxu0 %v512
    %v589 = vpop.f32.mrf.mxu0
    %v590 = vadd.f32 %v494, %v589
    %v591 = vpop.f32.mrf.mxu0
    %v592 = vadd.f32 %v494, %v591
    %593 = vmatprep.mubr.f32.mxu0 0.0
    %594 = vmatmul.mubr.f32.gmra.mxu0 %v515
    %v595 = vpop.f32.mrf.mxu0
    %v596 = vadd.f32 %v499, %v595
    %v597 = vpop.f32.mrf.mxu0
    %v598 = vadd.f32 %v499, %v597
    %599 = vmatprep.mubr.f32.mxu0 0.0
    %600 = vmatmul.mubr.f32.gmra.mxu0 %v518
    %v601 = vpop.f32.mrf.mxu0
    %v602 = vadd.f32 %v504, %v601
    %v603 = vpop.f32.mrf.mxu0
    %v604 = vadd.f32 %v504, %v603
    %605 = vmatprep.mubr.f32.mxu0 0.0
    %606 = vmatmul.mubr.f32.gmra.mxu0 %v521
    %v607 = vpop.f32.mrf.mxu0
    %v608 = vadd.f32 %v509, %v607
    %v609 = vpop.f32.mrf.mxu0
    %v610 = vadd.f32 %v509, %v609
    %611 = vdwg.mxu0
    %612 = vmatprep.subr.mxu0 0.0
    %613 = vmatpush1.msra.mxu0 0.0
    %614 = vmatprep.subr.mxu0 0.0
    %615 = vmatpush1.msra.mxu0 0.0
    %616 = vmatprep.subr.mxu0 0.0
    %617 = vmatpush1.msra.mxu0 0.0
    %618 = vmatprep.subr.mxu0 0.0
    %619 = vmatpush1.msra.mxu0 0.0
    %620 = vmatprep.subr.mxu0 0.0
    %621 = vmatpush1.msra.mxu0 0.0
    %622 = vmatprep.subr.mxu0 0.0
    %623 = vmatpush1.msra.mxu0 0.0
    %624 = vmatprep.subr.mxu0 0.0
    %625 = vmatpush1.msra.mxu0 0.0
    %626 = vmatprep.subr.mxu0 0.0
    %627 = vmatpush1.msra.mxu0 0.0
    %628 = vmatprep.subr.mxu0 0.0
    %629 = vmatpush1.msra.mxu0 0.0
    %630 = vmatprep.subr.mxu0 0.0
    %631 = vmatpush1.msra.mxu0 0.0
    %632 = vmatprep.subr.mxu0 0.0
    %633 = vmatpush1.msra.mxu0 0.0
    %634 = vmatprep.subr.mxu0 0.0
    %635 = vmatpush1.msra.mxu0 0.0
    %636 = vmatprep.subr.mxu0 %v482
    %637 = vmatpush1.msra.mxu0 %v481
    %638 = vmatprep.subr.mxu0 %v478
    %639 = vmatpush1.msra.mxu0 %v477
    %640 = vmatprep.subr.mxu0 %v474
    %641 = vmatpush1.msra.mxu0 %v473
    %642 = vmatprep.subr.mxu0 %v470
    %643 = vmatpush1.msra.mxu0 %v469
    %644 = vmatprep.subr.mxu0 0.0
    %645 = vmatpush2.msra.mxu0 0.0
    %646 = vmatprep.subr.mxu0 0.0
    %647 = vmatpush2.msra.mxu0 0.0
    %648 = vmatprep.subr.mxu0 0.0
    %649 = vmatpush2.msra.mxu0 0.0
    %650 = vmatprep.subr.mxu0 0.0
    %651 = vmatpush2.msra.mxu0 0.0
    %652 = vmatprep.subr.mxu0 0.0
    %653 = vmatpush2.msra.mxu0 0.0
    %654 = vmatprep.subr.mxu0 0.0
    %655 = vmatpush2.msra.mxu0 0.0
    %656 = vmatprep.subr.mxu0 0.0
    %657 = vmatpush2.msra.mxu0 0.0
    %658 = vmatprep.subr.mxu0 0.0
    %659 = vmatpush2.msra.mxu0 0.0
    %660 = vmatprep.subr.mxu0 0.0
    %661 = vmatpush2.msra.mxu0 0.0
    %662 = vmatprep.subr.mxu0 0.0
    %663 = vmatpush2.msra.mxu0 0.0
    %664 = vmatprep.subr.mxu0 0.0
    %665 = vmatpush2.msra.mxu0 0.0
    %666 = vmatprep.subr.mxu0 0.0
    %667 = vmatpush2.msra.mxu0 0.0
    %668 = vmatprep.subr.mxu0 0.0
    %669 = vmatpush2.msra.mxu0 0.0
    %670 = vmatprep.subr.mxu0 0.0
    %671 = vmatpush2.msra.mxu0 0.0
    %672 = vmatprep.subr.mxu0 0.0
    %673 = vmatpush2.msra.mxu0 0.0
    %674 = vmatprep.subr.mxu0 0.0
    %675 = vmatpush2.msra.mxu0 0.0
    %676 = vmatprep.mubr.f32.mxu0 0.0
    %677 = vmatmul.mubr.f32.gmra.mxu0 %v512
    %v678 = vpop.f32.mrf.mxu0
    %v679 = vadd.f32 %v494, %v678
    %v680 = vpop.f32.mrf.mxu0
    %v681 = vadd.f32 %v494, %v680
    %682 = vmatprep.mubr.f32.mxu0 0.0
    %683 = vmatmul.mubr.f32.gmra.mxu0 %v515
    %v684 = vpop.f32.mrf.mxu0
    %v685 = vadd.f32 %v499, %v684
    %v686 = vpop.f32.mrf.mxu0
    %v687 = vadd.f32 %v499, %v686
    %688 = vmatprep.mubr.f32.mxu0 0.0
    %689 = vmatmul.mubr.f32.gmra.mxu0 %v518
    %v690 = vpop.f32.mrf.mxu0
    %v691 = vadd.f32 %v504, %v690
    %v692 = vpop.f32.mrf.mxu0
    %v693 = vadd.f32 %v504, %v692
    %694 = vmatprep.mubr.f32.mxu0 0.0
    %695 = vmatmul.mubr.f32.gmra.mxu0 %v521
    %v696 = vpop.f32.mrf.mxu0
    %v697 = vadd.f32 %v509, %v696
    %v698 = vpop.f32.mrf.mxu0
    %v699 = vadd.f32 %v509, %v698
    %700 = vdwg.mxu0
    %v701 = vld [vmem:[%s1 + $0x60] sm:$0xff]
    %v702 = vld [vmem:[%s1 + $0x68] sm:$0xff]
    %v703 = vld [vmem:[%s1 + $0x70] sm:$0xff]
    %v704 = vld [vmem:[%s1 + $0x78] sm:$0xff]
    %v705 = vld [vmem:[%s1 + $0xc0] sm:$0x1]
    %v706 = vld [vmem:[%s2] sm:$0xff]
    %v707 = vld [vmem:[%s2 + $0x8] sm:$0xff]
    %v708 = vld [vmem:[%s2 + $0x10] sm:$0xff]
    %v709 = vld [vmem:[%s2 + $0x18] sm:$0xff]
    %v710 = vld [vmem:[%s2 + $0x20] sm:$0xff]
    %v711 = vld [vmem:[%s2 + $0x28] sm:$0xff]
    %v712 = vld [vmem:[%s2 + $0x30] sm:$0xff]
    %v713 = vld [vmem:[%s2 + $0x38] sm:$0xff]
    %v715 = vsel %vm276, %v701, 0
    %v718 = vsel %vm276, %v702, 0
    %v721 = vsel %vm276, %v703, 0
    %v724 = vsel %vm276, %v704, 0
    %726 = vmatprep.subr.mxu0 0.0
    %727 = vmatpush1.msra.mxu0 0.0
    %728 = vmatprep.subr.mxu0 0.0
    %729 = vmatpush1.msra.mxu0 0.0
    %730 = vmatprep.subr.mxu0 0.0
    %731 = vmatpush1.msra.mxu0 0.0
    %732 = vmatprep.subr.mxu0 0.0
    %733 = vmatpush1.msra.mxu0 0.0
    %734 = vmatprep.subr.mxu0 0.0
    %735 = vmatpush1.msra.mxu0 0.0
    %736 = vmatprep.subr.mxu0 0.0
    %737 = vmatpush1.msra.mxu0 0.0
    %738 = vmatprep.subr.mxu0 0.0
    %739 = vmatpush1.msra.mxu0 0.0
    %740 = vmatprep.subr.mxu0 0.0
    %741 = vmatpush1.msra.mxu0 0.0
    %742 = vmatprep.subr.mxu0 0.0
    %743 = vmatpush1.msra.mxu0 0.0
    %744 = vmatprep.subr.mxu0 0.0
    %745 = vmatpush1.msra.mxu0 0.0
    %746 = vmatprep.subr.mxu0 0.0
    %747 = vmatpush1.msra.mxu0 0.0
    %748 = vmatprep.subr.mxu0 0.0
    %749 = vmatpush1.msra.mxu0 0.0
    %750 = vmatprep.subr.mxu0 %v713
    %751 = vmatpush1.msra.mxu0 %v712
    %752 = vmatprep.subr.mxu0 %v711
    %753 = vmatpush1.msra.mxu0 %v710
    %754 = vmatprep.subr.mxu0 %v709
    %755 = vmatpush1.msra.mxu0 %v708
    %756 = vmatprep.subr.mxu0 %v707
    %757 = vmatpush1.msra.mxu0 %v706
    %758 = vmatprep.subr.mxu0 0.0
    %759 = vmatpush2.msra.mxu0 0.0
    %760 = vmatprep.subr.mxu0 0.0
    %761 = vmatpush2.msra.mxu0 0.0
    %762 = vmatprep.subr.mxu0 0.0
    %763 = vmatpush2.msra.mxu0 0.0
    %764 = vmatprep.subr.mxu0 0.0
    %765 = vmatpush2.msra.mxu0 0.0
    %766 = vmatprep.subr.mxu0 0.0
    %767 = vmatpush2.msra.mxu0 0.0
    %768 = vmatprep.subr.mxu0 0.0
    %769 = vmatpush2.msra.mxu0 0.0
    %770 = vmatprep.subr.mxu0 0.0
    %771 = vmatpush2.msra.mxu0 0.0
    %772 = vmatprep.subr.mxu0 0.0
    %773 = vmatpush2.msra.mxu0 0.0
    %774 = vmatprep.subr.mxu0 0.0
    %775 = vmatpush2.msra.mxu0 0.0
    %776 = vmatprep.subr.mxu0 0.0
    %777 = vmatpush2.msra.mxu0 0.0
    %778 = vmatprep.subr.mxu0 0.0
    %779 = vmatpush2.msra.mxu0 0.0
    %780 = vmatprep.subr.mxu0 0.0
    %781 = vmatpush2.msra.mxu0 0.0
    %782 = vmatprep.subr.mxu0 0.0
    %783 = vmatpush2.msra.mxu0 0.0
    %784 = vmatprep.subr.mxu0 0.0
    %785 = vmatpush2.msra.mxu0 0.0
    %786 = vmatprep.subr.mxu0 0.0
    %787 = vmatpush2.msra.mxu0 0.0
    %788 = vmatprep.subr.mxu0 0.0
    %789 = vmatpush2.msra.mxu0 0.0
    %790 = vmatprep.mubr.f32.mxu0 0.0
    %791 = vmatmul.mubr.f32.gmra.mxu0 %v715
    %v792 = vpop.f32.mrf.mxu0
    %v793 = vadd.f32 0.0, %v792
    %v794 = vpop.f32.mrf.mxu0
    %v795 = vadd.f32 0.0, %v794
    %796 = vmatprep.mubr.f32.mxu0 0.0
    %797 = vmatmul.mubr.f32.gmra.mxu0 %v718
    %v798 = vpop.f32.mrf.mxu0
    %v799 = vadd.f32 0.0, %v798
    %v800 = vpop.f32.mrf.mxu0
    %v801 = vadd.f32 0.0, %v800
    %802 = vmatprep.mubr.f32.mxu0 0.0
    %803 = vmatmul.mubr.f32.gmra.mxu0 %v721
    %v804 = vpop.f32.mrf.mxu0
    %v805 = vadd.f32 0.0, %v804
    %v806 = vpop.f32.mrf.mxu0
    %v807 = vadd.f32 0.0, %v806
    %808 = vmatprep.mubr.f32.mxu0 0.0
    %809 = vmatmul.mubr.f32.gmra.mxu0 %v724
    %v810 = vpop.f32.mrf.mxu0
    %v811 = vadd.f32 0.0, %v810
    %v812 = vpop.f32.mrf.mxu0
    %v813 = vadd.f32 0.0, %v812
    %814 = vdwg.mxu0
    %v815 = vadd.f32 %v590, %v793
    %v816 = vadd.f32 %v592, %v795
    %v817 = vadd.f32 %v596, %v799
    %v818 = vadd.f32 %v598, %v801
    %v819 = vadd.f32 %v602, %v805
    %v820 = vadd.f32 %v604, %v807
    %v821 = vadd.f32 %v608, %v811
    %v822 = vadd.f32 %v610, %v813
    %v823 = vtanh.pop %v815
    %v824 = vtanh.pop %v816
    %v825 = vtanh.pop %v817
    %v826 = vtanh.pop %v818
    %v827 = vtanh.pop %v819
    %v828 = vtanh.pop %v820
    %v829 = vtanh.pop %v821
    %v830 = vtanh.pop %v822
    %832 = vset.pattern.permute.xlu0 32
    %833 = vperm.xlu0 %832, %v705
    %v834 = vpop.permute.xlu0 %833
    %v836 = vsel %vm276, %v705, 0
    %838 = vmatprep.subr.mxu0 0.0
    %839 = vmatpush1.msra.mxu0 0.0
    %840 = vmatprep.subr.mxu0 0.0
    %841 = vmatpush1.msra.mxu0 0.0
    %842 = vmatprep.subr.mxu0 0.0
    %843 = vmatpush1.msra.mxu0 0.0
    %844 = vmatprep.subr.mxu0 0.0
    %845 = vmatpush1.msra.mxu0 0.0
    %846 = vmatprep.subr.mxu0 0.0
    %847 = vmatpush1.msra.mxu0 0.0
    %848 = vmatprep.subr.mxu0 0.0
    %849 = vmatpush1.msra.mxu0 0.0
    %850 = vmatprep.subr.mxu0 0.0
    %851 = vmatpush1.msra.mxu0 0.0
    %852 = vmatprep.subr.mxu0 0.0
    %853 = vmatpush1.msra.mxu0 0.0
    %854 = vmatprep.subr.mxu0 0.0
    %855 = vmatpush1.msra.mxu0 0.0
    %856 = vmatprep.subr.mxu0 0.0
    %857 = vmatpush1.msra.mxu0 0.0
    %858 = vmatprep.subr.mxu0 0.0
    %859 = vmatpush1.msra.mxu0 0.0
    %860 = vmatprep.subr.mxu0 0.0
    %861 = vmatpush1.msra.mxu0 0.0
    %862 = vmatprep.subr.mxu0 %v830
    %863 = vmatpush1.msra.mxu0 %v829
    %864 = vmatprep.subr.mxu0 %v828
    %865 = vmatpush1.msra.mxu0 %v827
    %866 = vmatprep.subr.mxu0 %v826
    %867 = vmatpush1.msra.mxu0 %v825
    %868 = vmatprep.subr.mxu0 %v824
    %869 = vmatpush1.msra.mxu0 %v823
    %870 = vmatprep.subr.mxu0 0.0
    %871 = vmatpush2.msra.mxu0 0.0
    %872 = vmatprep.subr.mxu0 0.0
    %873 = vmatpush2.msra.mxu0 0.0
    %874 = vmatprep.subr.mxu0 0.0
    %875 = vmatpush2.msra.mxu0 0.0
    %876 = vmatprep.subr.mxu0 0.0
    %877 = vmatpush2.msra.mxu0 0.0
    %878 = vmatprep.subr.mxu0 0.0
    %879 = vmatpush2.msra.mxu0 0.0
    %880 = vmatprep.subr.mxu0 0.0
    %881 = vmatpush2.msra.mxu0 0.0
    %882 = vmatprep.subr.mxu0 0.0
    %883 = vmatpush2.msra.mxu0 0.0
    %884 = vmatprep.subr.mxu0 0.0
    %885 = vmatpush2.msra.mxu0 0.0
    %886 = vmatprep.subr.mxu0 0.0
    %887 = vmatpush2.msra.mxu0 0.0
    %888 = vmatprep.subr.mxu0 0.0
    %889 = vmatpush2.msra.mxu0 0.0
    %890 = vmatprep.subr.mxu0 0.0
    %891 = vmatpush2.msra.mxu0 0.0
    %892 = vmatprep.subr.mxu0 0.0
    %893 = vmatpush2.msra.mxu0 0.0
    %894 = vmatprep.subr.mxu0 0.0
    %895 = vmatpush2.msra.mxu0 0.0
    %896 = vmatprep.subr.mxu0 0.0
    %897 = vmatpush2.msra.mxu0 0.0
    %898 = vmatprep.subr.mxu0 0.0
    %899 = vmatpush2.msra.mxu0 0.0
    %900 = vmatprep.subr.mxu0 0.0
    %901 = vmatpush2.msra.mxu0 0.0
    %902 = vmatprep.mubr.f32.mxu0 0.0
    %903 = vmatmul.mubr.f32.gmra.mxu0 %v836
    %v904 = vpop.f32.mrf.mxu0
    %v905 = vadd.f32 %v834, %v904
    %v906 = vpop.f32.mrf.mxu0
    %v907 = vadd.f32 %v834, %v906
    %908 = vdwg.mxu0
    %v911 = vcombine.low %v905, %v907
    %v913 = vunpack.c.l.s4 1966171168
    %v914 = vunpack.c.0.s8 %v913
    %v915 = vlaneseq
    %v916 = vshrl.u32 %v915, 7
    %v917 = vsub.s32 %v914, %v916
    %v918 = vrot.slane %v911, %v917
    %v920 = vunpack.c.l.s4 1966171168
    %v921 = vunpack.c.0.s8 %v920
    %v922 = vlaneseq
    %v923 = vshrl.u32 %v922, 7
    %v924 = vsub.s32 %v921, %v923
    %v925 = vrot.slane %v918, %v924
    %v927 = vlaneseq
    %vm928 = vcmp.ge.s32.totalorder %v927, 0
    %vm929 = vcmp.lt.s32.totalorder %v927, 256
    %vm930 = vmand %vm928, %vm929
    %931 = vst.msk [vmem:[%s3] ss:$2 sm:$0x3] %vm930, %v925
    %932 = vmatprep.subr.mxu0 0.0
    %933 = vmatpush1.msra.mxu0 0.0
    %934 = vmatprep.subr.mxu0 0.0
    %935 = vmatpush1.msra.mxu0 0.0
    %936 = vmatprep.subr.mxu0 0.0
    %937 = vmatpush1.msra.mxu0 0.0
    %938 = vmatprep.subr.mxu0 0.0
    %939 = vmatpush1.msra.mxu0 0.0
    %940 = vmatprep.subr.mxu0 0.0
    %941 = vmatpush1.msra.mxu0 0.0
    %942 = vmatprep.subr.mxu0 0.0
    %943 = vmatpush1.msra.mxu0 0.0
    %944 = vmatprep.subr.mxu0 0.0
    %945 = vmatpush1.msra.mxu0 0.0
    %946 = vmatprep.subr.mxu0 0.0
    %947 = vmatpush1.msra.mxu0 0.0
    %948 = vmatprep.subr.mxu0 0.0
    %949 = vmatpush1.msra.mxu0 0.0
    %950 = vmatprep.subr.mxu0 0.0
    %951 = vmatpush1.msra.mxu0 0.0
    %952 = vmatprep.subr.mxu0 0.0
    %953 = vmatpush1.msra.mxu0 0.0
    %954 = vmatprep.subr.mxu0 0.0
    %955 = vmatpush1.msra.mxu0 0.0
    %956 = vmatprep.subr.mxu0 %v830
    %957 = vmatpush1.msra.mxu0 %v829
    %958 = vmatprep.subr.mxu0 %v828
    %959 = vmatpush1.msra.mxu0 %v827
    %960 = vmatprep.subr.mxu0 %v826
    %961 = vmatpush1.msra.mxu0 %v825
    %962 = vmatprep.subr.mxu0 %v824
    %963 = vmatpush1.msra.mxu0 %v823
    %964 = vmatprep.subr.mxu0 0.0
    %965 = vmatpush2.msra.mxu0 0.0
    %966 = vmatprep.subr.mxu0 0.0
    %967 = vmatpush2.msra.mxu0 0.0
    %968 = vmatprep.subr.mxu0 0.0
    %969 = vmatpush2.msra.mxu0 0.0
    %970 = vmatprep.subr.mxu0 0.0
    %971 = vmatpush2.msra.mxu0 0.0
    %972 = vmatprep.subr.mxu0 0.0
    %973 = vmatpush2.msra.mxu0 0.0
    %974 = vmatprep.subr.mxu0 0.0
    %975 = vmatpush2.msra.mxu0 0.0
    %976 = vmatprep.subr.mxu0 0.0
    %977 = vmatpush2.msra.mxu0 0.0
    %978 = vmatprep.subr.mxu0 0.0
    %979 = vmatpush2.msra.mxu0 0.0
    %980 = vmatprep.subr.mxu0 0.0
    %981 = vmatpush2.msra.mxu0 0.0
    %982 = vmatprep.subr.mxu0 0.0
    %983 = vmatpush2.msra.mxu0 0.0
    %984 = vmatprep.subr.mxu0 0.0
    %985 = vmatpush2.msra.mxu0 0.0
    %986 = vmatprep.subr.mxu0 0.0
    %987 = vmatpush2.msra.mxu0 0.0
    %988 = vmatprep.subr.mxu0 0.0
    %989 = vmatpush2.msra.mxu0 0.0
    %990 = vmatprep.subr.mxu0 0.0
    %991 = vmatpush2.msra.mxu0 0.0
    %992 = vmatprep.subr.mxu0 0.0
    %993 = vmatpush2.msra.mxu0 0.0
    %994 = vmatprep.subr.mxu0 0.0
    %995 = vmatpush2.msra.mxu0 0.0
    %996 = vmatprep.mubr.f32.mxu0 0.0
    %997 = vmatmul.mubr.f32.gmra.mxu0 %v715
    %v998 = vpop.f32.mrf.mxu0
    %v999 = vadd.f32 0.0, %v998
    %v1000 = vpop.f32.mrf.mxu0
    %v1001 = vadd.f32 0.0, %v1000
    %1002 = vmatprep.mubr.f32.mxu0 0.0
    %1003 = vmatmul.mubr.f32.gmra.mxu0 %v718
    %v1004 = vpop.f32.mrf.mxu0
    %v1005 = vadd.f32 0.0, %v1004
    %v1006 = vpop.f32.mrf.mxu0
    %v1007 = vadd.f32 0.0, %v1006
    %1008 = vmatprep.mubr.f32.mxu0 0.0
    %1009 = vmatmul.mubr.f32.gmra.mxu0 %v721
    %v1010 = vpop.f32.mrf.mxu0
    %v1011 = vadd.f32 0.0, %v1010
    %v1012 = vpop.f32.mrf.mxu0
    %v1013 = vadd.f32 0.0, %v1012
    %1014 = vmatprep.mubr.f32.mxu0 0.0
    %1015 = vmatmul.mubr.f32.gmra.mxu0 %v724
    %v1016 = vpop.f32.mrf.mxu0
    %v1017 = vadd.f32 0.0, %v1016
    %v1018 = vpop.f32.mrf.mxu0
    %v1019 = vadd.f32 0.0, %v1018
    %1020 = vdwg.mxu0
    %v1021 = vadd.f32 %v679, %v999
    %v1022 = vadd.f32 %v681, %v1001
    %v1023 = vadd.f32 %v685, %v1005
    %v1024 = vadd.f32 %v687, %v1007
    %v1025 = vadd.f32 %v691, %v1011
    %v1026 = vadd.f32 %v693, %v1013
    %v1027 = vadd.f32 %v697, %v1017
    %v1028 = vadd.f32 %v699, %v1019
    %v1029 = vtanh.pop %v1021
    %v1030 = vtanh.pop %v1022
    %v1031 = vtanh.pop %v1023
    %v1032 = vtanh.pop %v1024
    %v1033 = vtanh.pop %v1025
    %v1034 = vtanh.pop %v1026
    %v1035 = vtanh.pop %v1027
    %v1036 = vtanh.pop %v1028
    %1037 = vmatprep.subr.mxu0 0.0
    %1038 = vmatpush1.msra.mxu0 0.0
    %1039 = vmatprep.subr.mxu0 0.0
    %1040 = vmatpush1.msra.mxu0 0.0
    %1041 = vmatprep.subr.mxu0 0.0
    %1042 = vmatpush1.msra.mxu0 0.0
    %1043 = vmatprep.subr.mxu0 0.0
    %1044 = vmatpush1.msra.mxu0 0.0
    %1045 = vmatprep.subr.mxu0 0.0
    %1046 = vmatpush1.msra.mxu0 0.0
    %1047 = vmatprep.subr.mxu0 0.0
    %1048 = vmatpush1.msra.mxu0 0.0
    %1049 = vmatprep.subr.mxu0 0.0
    %1050 = vmatpush1.msra.mxu0 0.0
    %1051 = vmatprep.subr.mxu0 0.0
    %1052 = vmatpush1.msra.mxu0 0.0
    %1053 = vmatprep.subr.mxu0 0.0
    %1054 = vmatpush1.msra.mxu0 0.0
    %1055 = vmatprep.subr.mxu0 0.0
    %1056 = vmatpush1.msra.mxu0 0.0
    %1057 = vmatprep.subr.mxu0 0.0
    %1058 = vmatpush1.msra.mxu0 0.0
    %1059 = vmatprep.subr.mxu0 0.0
    %1060 = vmatpush1.msra.mxu0 0.0
    %1061 = vmatprep.subr.mxu0 %v1036
    %1062 = vmatpush1.msra.mxu0 %v1035
    %1063 = vmatprep.subr.mxu0 %v1034
    %1064 = vmatpush1.msra.mxu0 %v1033
    %1065 = vmatprep.subr.mxu0 %v1032
    %1066 = vmatpush1.msra.mxu0 %v1031
    %1067 = vmatprep.subr.mxu0 %v1030
    %1068 = vmatpush1.msra.mxu0 %v1029
    %1069 = vmatprep.subr.mxu0 0.0
    %1070 = vmatpush2.msra.mxu0 0.0
    %1071 = vmatprep.subr.mxu0 0.0
    %1072 = vmatpush2.msra.mxu0 0.0
    %1073 = vmatprep.subr.mxu0 0.0
    %1074 = vmatpush2.msra.mxu0 0.0
    %1075 = vmatprep.subr.mxu0 0.0
    %1076 = vmatpush2.msra.mxu0 0.0
    %1077 = vmatprep.subr.mxu0 0.0
    %1078 = vmatpush2.msra.mxu0 0.0
    %1079 = vmatprep.subr.mxu0 0.0
    %1080 = vmatpush2.msra.mxu0 0.0
    %1081 = vmatprep.subr.mxu0 0.0
    %1082 = vmatpush2.msra.mxu0 0.0
    %1083 = vmatprep.subr.mxu0 0.0
    %1084 = vmatpush2.msra.mxu0 0.0
    %1085 = vmatprep.subr.mxu0 0.0
    %1086 = vmatpush2.msra.mxu0 0.0
    %1087 = vmatprep.subr.mxu0 0.0
    %1088 = vmatpush2.msra.mxu0 0.0
    %1089 = vmatprep.subr.mxu0 0.0
    %1090 = vmatpush2.msra.mxu0 0.0
    %1091 = vmatprep.subr.mxu0 0.0
    %1092 = vmatpush2.msra.mxu0 0.0
    %1093 = vmatprep.subr.mxu0 0.0
    %1094 = vmatpush2.msra.mxu0 0.0
    %1095 = vmatprep.subr.mxu0 0.0
    %1096 = vmatpush2.msra.mxu0 0.0
    %1097 = vmatprep.subr.mxu0 0.0
    %1098 = vmatpush2.msra.mxu0 0.0
    %1099 = vmatprep.subr.mxu0 0.0
    %1100 = vmatpush2.msra.mxu0 0.0
    %1101 = vmatprep.mubr.f32.mxu0 0.0
    %1102 = vmatmul.mubr.f32.gmra.mxu0 %v836
    %v1103 = vpop.f32.mrf.mxu0
    %v1104 = vadd.f32 %v834, %v1103
    %v1105 = vpop.f32.mrf.mxu0
    %v1106 = vadd.f32 %v834, %v1105
    %1107 = vdwg.mxu0
    %v1110 = vcombine.low %v1104, %v1106
    %v1112 = vunpack.c.l.s4 1966171168
    %v1113 = vunpack.c.0.s8 %v1112
    %v1114 = vlaneseq
    %v1115 = vshrl.u32 %v1114, 7
    %v1116 = vsub.s32 %v1113, %v1115
    %v1117 = vrot.slane %v1110, %v1116
    %v1119 = vunpack.c.l.s4 1966171168
    %v1120 = vunpack.c.0.s8 %v1119
    %v1121 = vlaneseq
    %v1122 = vshrl.u32 %v1121, 7
    %v1123 = vsub.s32 %v1120, %v1122
    %v1124 = vrot.slane %v1117, %v1123
    %s1126 = scalar_lea.vmem %s3, 1
    %1127 = vst.msk [vmem:[%s1126] ss:$2 sm:$0x3] %vm930, %v1124
    %1128 = vst [vmem:[#allocation2] sm:$0xff] %v1029
    %1129 = vst [vmem:[#allocation2 + $0x8] sm:$0xff] %v1030
    %1130 = vst [vmem:[#allocation2 + $0x10] sm:$0xff] %v1031
    %1131 = vst [vmem:[#allocation2 + $0x18] sm:$0xff] %v1032
    %1132 = vst [vmem:[#allocation2 + $0x20] sm:$0xff] %v1033
    %1133 = vst [vmem:[#allocation2 + $0x28] sm:$0xff] %v1034
    %1134 = vst [vmem:[#allocation2 + $0x30] sm:$0xff] %v1035
    %1135 = vst [vmem:[#allocation2 + $0x38] sm:$0xff] %v1036
    // Predicated region
    $region14: #{_forward_jit.1} parent=1 // pred_check
      _
    $region15: #{_forward_jit.1} parent=1 // pred_check_branch
      %1137 = sbr.rel (0) target = $region17
    $region16: #{_forward_jit.1} parent=1 // pred_region
      _
    $region17: #{_forward_jit.1} parent=1 // pred_fallthru
      _
    // Predicated region
    $region18: #{_forward_jit.1} parent=1 // pred_check
      _
    $region19: #{_forward_jit.1} parent=1 // pred_check_branch
      %1139 = sbr.rel (0) target = $region21
    $region20: #{_forward_jit.1} parent=1 // pred_region
      %s1141 = ssub.s32 1024, 1024
      %1142 = vsyncadd [#allocation3], %s1141
      %s1143 = sshll.u32 [#allocation2], 4
      %s1144 = int_to_ptr.vmem [resolvable:$true] %s1143
      %1149 = dma.vmem_to_hbm [thread:$0]  %s1144, 1024, %s4, [#allocation3], 256, 256, 16
    $region21: #{_forward_jit.1} parent=1 // pred_fallthru
      _
    // Predicated region
    $region22: #{_forward_jit.1} parent=1 // pred_check
      _
    $region23: #{_forward_jit.1} parent=1 // pred_check_branch
      %1151 = sbr.rel (0) target = $region25
    $region24: #{_forward_jit.1} parent=1 // pred_region
      _
    $region25: #{_forward_jit.1} parent=1 // pred_fallthru
      _
    // Predicated region
    $region26: #{_forward_jit.1} parent=1 // pred_check
      _
    $region27: #{_forward_jit.1} parent=1 // pred_check_branch
      %1153 = sbr.rel (0) target = $region29
    $region28: #{_forward_jit.1} parent=1 // pred_region
      %1154 = dma.done [#allocation3], 1024
    $region29: #{_forward_jit.1} parent=1 // pred_fallthru
      _
    %1155 = vsyncpa [#allocation3], 1

</llo_original>
